<compile_context>
chip_gen: v7x
topology: tpu7x:2x2x1
jax: 0.10.0
libtpu: 0.0.40
codegen_flags: <defaults>
</compile_context>

<pallas_src>
import functools

import jax
import jax.numpy as jnp
from jax.experimental import pallas as pl
from jax.experimental.pallas import tpu as pltpu


IN_DIM = 64
HID_DIM = 32
OUT_DIM = 4
DEFAULT_BLOCK_B = 8192   # large tiles amortize the ~0.35us per-step overhead
MAX_BLOCK_B = 32768      # 2x-buffered bf16 state tile stays << v7x 64 MiB VMEM


def _round_up(x, m):
    return (x + m - 1) // m * m


def _actor_kernel(x_ref, w1_ref, b1_ref, w2_ref, b2_ref, alpha_ref, beta_ref):
    # fc1: bf16 inputs on the MXU, f32 accumulation; tanh in f32.
    h = jnp.dot(x_ref[...], w1_ref[...], preferred_element_type=jnp.float32)
    h = jnp.tanh(h + b1_ref[...])                                   # (TB, 32)
    # fc2 kept fully in f32 (w2 is tiny & resident; keeps activations exact).
    z = jnp.dot(h, w2_ref[...], preferred_element_type=jnp.float32) + b2_ref[...]
    # Numerically-stable softplus (matches F.softplus), then +1.0.
    out = jnp.maximum(z, 0.0) + jnp.log1p(jnp.exp(-jnp.abs(z))) + 1.0  # (TB, 4)
    alpha_ref[...] = out[:, :2]
    beta_ref[...] = out[:, 2:]


@functools.partial(jax.jit, static_argnames=("block_b",))
def actor_forward(state, w1, b1, w2, b2, *, block_b=DEFAULT_BLOCK_B):
    """Full ActorNet forward in one Pallas kernel; returns (alpha, beta)."""
    B = state.shape[0]

    # Batch tile: multiple of 8 (sublane granularity), capped for VMEM.
    TB = min(min(block_b, MAX_BLOCK_B), _round_up(B, 8))
    Bp = _round_up(B, TB)

    # HBM-bandwidth lever: stream the state (and fc1 weight) as bf16.
    x = state.astype(jnp.bfloat16)
    if Bp != B:
        x = jnp.pad(x, ((0, Bp - B), (0, 0)))
    w1b = w1.astype(jnp.bfloat16)

    cost = pl.CostEstimate(
        flops=2 * Bp * (IN_DIM * HID_DIM + HID_DIM * OUT_DIM),
        transcendentals=Bp * (HID_DIM + 2 * OUT_DIM),
        bytes_accessed=(Bp * IN_DIM * 2                      # bf16 state in
                        + 2 * Bp * (OUT_DIM // 2) * 4        # f32 alpha/beta out
                        + IN_DIM * HID_DIM * 2               # bf16 W1
                        + (HID_DIM * OUT_DIM + HID_DIM + OUT_DIM) * 4),
    )

    alpha, beta = pl.pallas_call(
        _actor_kernel,
        out_shape=(
            jax.ShapeDtypeStruct((Bp, OUT_DIM // 2), jnp.float32),
            jax.ShapeDtypeStruct((Bp, OUT_DIM // 2), jnp.float32),
        ),
        grid=(Bp // TB,),
        in_specs=[
            pl.BlockSpec((TB, IN_DIM), lambda i: (i, 0)),         # state tiles
            pl.BlockSpec((IN_DIM, HID_DIM), lambda i: (0, 0)),    # W1 (resident)
            pl.BlockSpec((1, HID_DIM), lambda i: (0, 0)),         # b1
            pl.BlockSpec((HID_DIM, OUT_DIM), lambda i: (0, 0)),   # W2
            pl.BlockSpec((1, OUT_DIM), lambda i: (0, 0)),         # b2
        ],
        out_specs=(
            pl.BlockSpec((TB, OUT_DIM // 2), lambda i: (i, 0)),   # alpha
            pl.BlockSpec((TB, OUT_DIM // 2), lambda i: (i, 0)),   # beta
        ),
        compiler_params=pltpu.CompilerParams(
            dimension_semantics=("parallel",)),                   # megacore on v7x
        cost_estimate=cost,
    )(x, w1b, b1, w2, b2)

    # Strip batch padding (shapes are static under jit, so this fuses).
    return alpha[:B], beta[:B]


def orthogonal(key, shape, gain=1.0, dtype=jnp.float32):
    """Deterministic orthogonal init (same scheme as nn.init.orthogonal_)."""
    rows, cols = shape
    flat_shape = (max(rows, cols), min(rows, cols))
    a = jax.random.normal(key, flat_shape, dtype)
    q, r = jnp.linalg.qr(a)
    q = q * jnp.sign(jnp.diag(r))[None, :]   # sign fix -> unique decomposition
    if rows < cols:
        q = q.T
    return (gain * q[:rows, :cols]).astype(dtype)


def init_params(key):
    k1, k2 = jax.random.split(key)
    # PyTorch stores Linear weight as (out, in); we transpose to (in, out).
    w1_torch = orthogonal(k1, (HID_DIM, IN_DIM))   # fc1.weight
    w2_torch = orthogonal(k2, (OUT_DIM, HID_DIM))  # fc2.weight
    w1 = w1_torch.T                                # (64, 32)
    w2 = w2_torch.T                                # (32, 4)
    b1 = jnp.zeros((1, HID_DIM), jnp.float32)      # fc1.bias = 0
    b2 = jnp.zeros((1, OUT_DIM), jnp.float32)      # fc2.bias = 0
    return w1, b1, w2, b2


def _reference_forward(state, w1, b1, w2, b2):
    h = jnp.tanh(state @ w1 + b1)
    z = h @ w2 + b2
    out = jax.nn.softplus(z) + 1.0
    return out[..., :2], out[..., 2:]


if __name__ == "__main__":
    key = jax.random.PRNGKey(0)
    pkey, xkey = jax.random.split(key)
    w1, b1, w2, b2 = init_params(pkey)

    # Small batch, deliberately NOT a multiple of 8 to exercise the padding path.
    B = 10
    state = jax.random.normal(xkey, (B, IN_DIM), jnp.float32)

    alpha, beta = actor_forward(state, w1, b1, w2, b2)
    jax.block_until_ready((alpha, beta))

    assert alpha.shape == (B, 2) and beta.shape == (B, 2)

    # Tight check against a reference that uses the same bf16 input/W1 cast.
    a_mp, b_mp = _reference_forward(
        state.astype(jnp.bfloat16).astype(jnp.float32),
        w1.astype(jnp.bfloat16).astype(jnp.float32), b1, w2, b2)
    assert jnp.allclose(alpha, a_mp, atol=1e-4, rtol=1e-4)
    assert jnp.allclose(beta, b_mp, atol=1e-4, rtol=1e-4)

    # Loose check against the full-f32 reference (bf16 input rounding only).
    a_f32, b_f32 = _reference_forward(state, w1, b1, w2, b2)
    assert jnp.allclose(alpha, a_f32, atol=5e-2, rtol=5e-2)
    assert jnp.allclose(beta, b_f32, atol=5e-2, rtol=5e-2)

    # Beta-distribution concentrations are >= 1 by construction (softplus + 1).
    assert bool(jnp.all(alpha >= 1.0)) and bool(jnp.all(beta >= 1.0))

    print("KERNEL_OK")
</pallas_src>

<mosaic_0001>
module attributes {stable_mosaic.version = 11 : i64} {
  func.func @_actor_kernel(%arg0: i32, %arg1: memref<16x64xbf16, #tpu.memory_space<vmem>>, %arg2: memref<64x32xbf16, #tpu.memory_space<vmem>>, %arg3: memref<1x32xf32, #tpu.memory_space<vmem>>, %arg4: memref<32x4xf32, #tpu.memory_space<vmem>>, %arg5: memref<1x4xf32, #tpu.memory_space<vmem>>, %arg6: memref<16x2xf32, #tpu.memory_space<vmem>>, %arg7: memref<16x2xf32, #tpu.memory_space<vmem>>) attributes {dimension_semantics = [#tpu.dimension_semantics<parallel>], iteration_bounds = array<i64: 1>, scalar_prefetch = 0 : i64, scratch_operands = 0 : i64, tpu.core_type = #tpu.core_type<tc>, window_params = [{transform_indices = @transform_0, window_bounds = array<i64: 16, 64>}, {pipeline_mode = #tpu.pipeline_mode<synchronous>, transform_indices = @transform_1, window_bounds = array<i64: 64, 32>}, {pipeline_mode = #tpu.pipeline_mode<synchronous>, transform_indices = @transform_2, window_bounds = array<i64: 1, 32>}, {pipeline_mode = #tpu.pipeline_mode<synchronous>, transform_indices = @transform_3, window_bounds = array<i64: 32, 4>}, {pipeline_mode = #tpu.pipeline_mode<synchronous>, transform_indices = @transform_4, window_bounds = array<i64: 1, 4>}, {transform_indices = @transform_5, window_bounds = array<i64: 16, 2>}, {transform_indices = @transform_6, window_bounds = array<i64: 16, 2>}]} {
    %c0 = arith.constant 0 : index
    %c0_0 = arith.constant 0 : index
    %0 = vector.load %arg1[%c0, %c0_0] : memref<16x64xbf16, #tpu.memory_space<vmem>>, vector<16x64xbf16>
    %c0_1 = arith.constant 0 : index
    %c0_2 = arith.constant 0 : index
    %1 = vector.load %arg2[%c0_1, %c0_2] : memref<64x32xbf16, #tpu.memory_space<vmem>>, vector<64x32xbf16>
    %cst = arith.constant dense<0.000000e+00> : vector<16x32xf32>
    %2 = tpu.matmul %0, %1, %cst {dimension_numbers = #tpu.dot_dimension_numbers<[1], [0], [0], [1], [0, 0, 1, 1], [], []>} : vector<16x64xbf16>, vector<64x32xbf16>, vector<16x32xf32> -> vector<16x32xf32>
    %c0_3 = arith.constant 0 : index
    %c0_4 = arith.constant 0 : index
    %3 = vector.load %arg3[%c0_3, %c0_4] : memref<1x32xf32, #tpu.memory_space<vmem>>, vector<1x32xf32>
    %4 = vector.broadcast %3 : vector<1x32xf32> to vector<16x32xf32>
    %5 = arith.addf %2, %4 : vector<16x32xf32>
    %6 = math.tanh %5 : vector<16x32xf32>
    %c0_5 = arith.constant 0 : index
    %c0_6 = arith.constant 0 : index
    %7 = vector.load %arg4[%c0_5, %c0_6] : memref<32x4xf32, #tpu.memory_space<vmem>>, vector<32x4xf32>
    %cst_7 = arith.constant dense<0.000000e+00> : vector<16x4xf32>
    %8 = tpu.matmul %6, %7, %cst_7 {dimension_numbers = #tpu.dot_dimension_numbers<[1], [0], [0], [1], [0, 0, 1, 1], [], []>} : vector<16x32xf32>, vector<32x4xf32>, vector<16x4xf32> -> vector<16x4xf32>
    %c0_8 = arith.constant 0 : index
    %c0_9 = arith.constant 0 : index
    %9 = vector.load %arg5[%c0_8, %c0_9] : memref<1x4xf32, #tpu.memory_space<vmem>>, vector<1x4xf32>
    %10 = vector.broadcast %9 : vector<1x4xf32> to vector<16x4xf32>
    %11 = arith.addf %8, %10 : vector<16x4xf32>
    %cst_10 = arith.constant 0.000000e+00 : f32
    %12 = vector.broadcast %cst_10 : f32 to vector<16x4xf32>
    %13 = arith.maximumf %11, %12 : vector<16x4xf32>
    %14 = math.absf %11 : vector<16x4xf32>
    %cst_11 = arith.constant 0.000000e+00 : f32
    %15 = vector.broadcast %cst_11 : f32 to vector<16x4xf32>
    %16 = arith.subf %15, %14 : vector<16x4xf32>
    %17 = math.exp %16 : vector<16x4xf32>
    %18 = math.log1p %17 : vector<16x4xf32>
    %19 = arith.addf %13, %18 : vector<16x4xf32>
    %cst_12 = arith.constant 1.000000e+00 : f32
    %20 = vector.broadcast %cst_12 : f32 to vector<16x4xf32>
    %21 = arith.addf %19, %20 : vector<16x4xf32>
    %22 = vector.extract_strided_slice %21 {offsets = [0, 0], sizes = [16, 2], strides = [1, 1]} : vector<16x4xf32> to vector<16x2xf32>
    %c0_13 = arith.constant 0 : index
    %c0_14 = arith.constant 0 : index
    %23 = vector.load %arg6[%c0_13, %c0_14] : memref<16x2xf32, #tpu.memory_space<vmem>>, vector<16x2xf32>
    tpu.vector_store %arg6[%c0_13, %c0_14], %22 {strides = array<i32>} : memref<16x2xf32, #tpu.memory_space<vmem>>, vector<16x2xf32>,
    %24 = vector.extract_strided_slice %21 {offsets = [0, 2], sizes = [16, 2], strides = [1, 1]} : vector<16x4xf32> to vector<16x2xf32>
    %c0_15 = arith.constant 0 : index
    %c0_16 = arith.constant 0 : index
    %25 = vector.load %arg7[%c0_15, %c0_16] : memref<16x2xf32, #tpu.memory_space<vmem>>, vector<16x2xf32>
    tpu.vector_store %arg7[%c0_15, %c0_16], %24 {strides = array<i32>} : memref<16x2xf32, #tpu.memory_space<vmem>>, vector<16x2xf32>,
    return
  }
  func.func @transform_0(%arg0: i32) -> (i32, i32) {
    %c0_i32 = arith.constant 0 : i32
    %c0_i32_0 = arith.constant 0 : i32
    return %arg0, %c0_i32 : i32, i32
  }
  func.func @transform_1(%arg0: i32) -> (i32, i32) {
    %c0_i32 = arith.constant 0 : i32
    %c0_i32_0 = arith.constant 0 : i32
    %c0_i32_1 = arith.constant 0 : i32
    return %c0_i32, %c0_i32_0 : i32, i32
  }
  func.func @transform_2(%arg0: i32) -> (i32, i32) {
    %c0_i32 = arith.constant 0 : i32
    %c0_i32_0 = arith.constant 0 : i32
    %c0_i32_1 = arith.constant 0 : i32
    return %c0_i32, %c0_i32_0 : i32, i32
  }
  func.func @transform_3(%arg0: i32) -> (i32, i32) {
    %c0_i32 = arith.constant 0 : i32
    %c0_i32_0 = arith.constant 0 : i32
    %c0_i32_1 = arith.constant 0 : i32
    return %c0_i32, %c0_i32_0 : i32, i32
  }
  func.func @transform_4(%arg0: i32) -> (i32, i32) {
    %c0_i32 = arith.constant 0 : i32
    %c0_i32_0 = arith.constant 0 : i32
    %c0_i32_1 = arith.constant 0 : i32
    return %c0_i32, %c0_i32_0 : i32, i32
  }
  func.func @transform_5(%arg0: i32) -> (i32, i32) {
    %c0_i32 = arith.constant 0 : i32
    %c0_i32_0 = arith.constant 0 : i32
    return %arg0, %c0_i32 : i32, i32
  }
  func.func @transform_6(%arg0: i32) -> (i32, i32) {
    %c0_i32 = arith.constant 0 : i32
    %c0_i32_0 = arith.constant 0 : i32
    return %arg0, %c0_i32 : i32, i32
  }
}

</mosaic_0001>

<llo_original>
// kernel: actor_forward.1
$region0: #{actor_forward.1}
  #allocation0 [shape = 'u32[]', space=smem, size = 0x4, offset = 0x4, fixed_abs, tag = 'smem constant byte address 0x4 - core index']
  #allocation1 [shape = 'u32[144,128]{1,0:T(1,128)}', space=vmem, size = 0x12000, scoped, tag = 'internal scratch']
  %s0 = inlined_call_operand.vmem [shape: bf16[16,64], index: 0, kind: input, shape index: {}]
  %s1 = inlined_call_operand.vmem [shape: bf16[64,32], index: 1, kind: input, shape index: {}]
  %s2 = inlined_call_operand.vmem [shape: f32[1,32], index: 2, kind: input, shape index: {}]
  %s3 = inlined_call_operand.vmem [shape: f32[32,4], index: 3, kind: input, shape index: {}]
  %s4 = inlined_call_operand.vmem [shape: f32[1,4], index: 4, kind: input, shape index: {}]
  %s5 = inlined_call_operand.vmem [shape: f32[16,2], index: 5, kind: output, shape index: {0}]
  %s6 = inlined_call_operand.vmem [shape: f32[16,2], index: 6, kind: output, shape index: {1}]
  %7 = xla_tuple %s5, %s6
  %s8 = sld [smem:[#allocation0]]
  $region38: #{actor_forward.1} parent=0
    _
  %s10 = ssub.s32 1, %s8
  %s11 = scalar_select 0, %s10, %s8
  // Predicated region
  $region2: #{actor_forward.1} parent=0 // pred_check
    _
  $region3: #{actor_forward.1} parent=0 // pred_check_branch
    %13 = sbr.rel (0) target = $region5
  $region4: #{actor_forward.1} parent=0 // pred_region
    _
  $region5: #{actor_forward.1} parent=0 // pred_fallthru
    _
  // Predicated region
  $region6: #{actor_forward.1} parent=0 // pred_check
    _
  $region7: #{actor_forward.1} parent=0 // pred_check_branch
    %15 = sbr.rel (0) target = $region9
  $region8: #{actor_forward.1} parent=0 // pred_region
    _
  $region9: #{actor_forward.1} parent=0 // pred_fallthru
    _
  // Predicated region
  $region10: #{actor_forward.1} parent=0 // pred_check
    _
  $region11: #{actor_forward.1} parent=0 // pred_check_branch
    %17 = sbr.rel (0) target = $region13
  $region12: #{actor_forward.1} parent=0 // pred_region
    _
  $region13: #{actor_forward.1} parent=0 // pred_fallthru
    _
  // Predicated region
  $region14: #{actor_forward.1} parent=0 // pred_check
    _
  $region15: #{actor_forward.1} parent=0 // pred_check_branch
    %19 = sbr.rel (0) target = $region17
  $region16: #{actor_forward.1} parent=0 // pred_region
    _
  $region17: #{actor_forward.1} parent=0 // pred_fallthru
    _
  // Predicated region
  $region18: #{actor_forward.1} parent=0 // pred_check
    _
  $region19: #{actor_forward.1} parent=0 // pred_check_branch
    %21 = sbr.rel (0) target = $region21
  $region20: #{actor_forward.1} parent=0 // pred_region
    _
  $region21: #{actor_forward.1} parent=0 // pred_fallthru
    _
  %v23 = vld [vmem:[%s0] sm:$0xf]
  %v24 = vld [vmem:[%s0 + $0x4] sm:$0xf]
  %v25 = vld [vmem:[%s1] sm:$0xf]
  %v26 = vld [vmem:[%s1 + $0x4] sm:$0xf]
  %v27 = vld [vmem:[%s1 + $0x8] sm:$0xf]
  %v28 = vld [vmem:[%s1 + $0xc] sm:$0xf]
  %v29 = vld [vmem:[%s1 + $0x10] sm:$0xf]
  %v30 = vld [vmem:[%s1 + $0x14] sm:$0xf]
  %v31 = vld [vmem:[%s1 + $0x18] sm:$0xf]
  %v32 = vld [vmem:[%s1 + $0x1c] sm:$0xf]
  %v33 = vld [vmem:[%s2] sm:$0x1]
  %v35 = vlaneseq
  %v36 = vshrl.u32 %v35, 7
  %v37 = vsub.s32 0, %v36
  %v38 = vrot.slane %v33, %v37
  %v42 = vunpack.c.l.b16 %v23
  %v43 = vunpack.c.l.b16 %v24
  %v44 = vpack.c.b16 %v43, %v42
  %v53 = vunpack.c.l.b16 %v25
  %v54 = vunpack.c.l.b16 %v26
  %v55 = vunpack.c.l.b16 %v27
  %v56 = vunpack.c.l.b16 %v28
  %v57 = vunpack.c.l.b16 %v29
  %v58 = vunpack.c.l.b16 %v30
  %v59 = vunpack.c.l.b16 %v31
  %v60 = vunpack.c.l.b16 %v32
  %v61 = vpack.c.b16 %v54, %v53
  %v62 = vpack.c.b16 %v56, %v55
  %v63 = vpack.c.b16 %v58, %v57
  %v64 = vpack.c.b16 %v60, %v59
  %vm69 = vcmask 523264
  %v71 = vsel %vm69, %v44, 0
  %73 = vmatprep.subr.bf16.mxu0 0
  %74 = vmatpush1.bf16.msra.mxu0 %v61
  %75 = vmatprep.subr.bf16.mxu0 0
  %76 = vmatpush1.bf16.msra.mxu0 %v62
  %77 = vmatprep.subr.bf16.mxu0 0
  %78 = vmatpush1.bf16.msra.mxu0 %v63
  %79 = vmatprep.subr.bf16.mxu0 0
  %80 = vmatpush1.bf16.msra.mxu0 %v64
  %81 = vmatprep.subr.bf16.mxu0 0
  %82 = vmatpush1.bf16.msra.mxu0 0
  %83 = vmatprep.subr.bf16.mxu0 0
  %84 = vmatpush1.bf16.msra.mxu0 0
  %85 = vmatprep.subr.bf16.mxu0 0
  %86 = vmatpush1.bf16.msra.mxu0 0
  %87 = vmatprep.subr.bf16.mxu0 0
  %88 = vmatpush1.bf16.msra.mxu0 0
  %89 = vmatprep.subr.bf16.mxu0 0
  %90 = vmatpush1.bf16.msra.mxu0 0
  %91 = vmatprep.subr.bf16.mxu0 0
  %92 = vmatpush1.bf16.msra.mxu0 0
  %93 = vmatprep.subr.bf16.mxu0 0
  %94 = vmatpush1.bf16.msra.mxu0 0
  %95 = vmatprep.subr.bf16.mxu0 0
  %96 = vmatpush1.bf16.msra.mxu0 0
  %97 = vmatprep.subr.bf16.mxu0 0
  %98 = vmatpush1.bf16.msra.mxu0 0
  %99 = vmatprep.subr.bf16.mxu0 0
  %100 = vmatpush1.bf16.msra.mxu0 0
  %101 = vmatprep.subr.bf16.mxu0 0
  %102 = vmatpush1.bf16.msra.mxu0 0
  %103 = vmatprep.subr.bf16.mxu0 0
  %104 = vmatpush1.bf16.msra.mxu0 0
  %105 = vmatprep.mubr.bf16.mxu0 0
  %106 = vmatmul.mubr.bf16.gmra.mrb[0].mxu0 %v71
  %v107 = vpop.f32.mrb[0].mxu0
  %v108 = vadd.f32 %v38, %v107
  %v109 = vpop.f32.mrb[0].mxu0
  %v110 = vpop.f32.mrb[0].mxu0
  %v111 = vadd.f32 %v38, %v110
  %v112 = vpop.f32.mrb[0].mxu0
  %113 = vdwg.mxu0
  %v114 = vtanh.pop %v108
  %v115 = vtanh.pop %v111
  %v116 = vld [vmem:[%s3] sm:$0xff]
  %v117 = vld [vmem:[%s3 + $0x8] sm:$0xff]
  %v118 = vld [vmem:[%s3 + $0x10] sm:$0xff]
  %v119 = vld [vmem:[%s3 + $0x18] sm:$0xff]
  %v120 = vld [vmem:[%s4] sm:$0x1]
  %v122 = vlaneseq
  %v123 = vshrl.u32 %v122, 7
  %v124 = vsub.s32 0, %v123
  %v125 = vrot.slane %v120, %v124
  %vm127 = vcmask 261120
  %v129 = vsel %vm127, %v114, 0
  %v132 = vsel %vm127, %v115, 0
  %134 = vmatprep.subr.mxu0 0.0
  %135 = vmatpush1.msra.mxu0 %v116
  %136 = vmatprep.subr.mxu0 0.0
  %137 = vmatpush1.msra.mxu0 %v117
  %138 = vmatprep.subr.mxu0 0.0
  %139 = vmatpush1.msra.mxu0 %v118
  %140 = vmatprep.subr.mxu0 0.0
  %141 = vmatpush1.msra.mxu0 %v119
  %142 = vmatprep.subr.mxu0 0.0
  %143 = vmatpush1.msra.mxu0 0.0
  %144 = vmatprep.subr.mxu0 0.0
  %145 = vmatpush1.msra.mxu0 0.0
  %146 = vmatprep.subr.mxu0 0.0
  %147 = vmatpush1.msra.mxu0 0.0
  %148 = vmatprep.subr.mxu0 0.0
  %149 = vmatpush1.msra.mxu0 0.0
  %150 = vmatprep.subr.mxu0 0.0
  %151 = vmatpush1.msra.mxu0 0.0
  %152 = vmatprep.subr.mxu0 0.0
  %153 = vmatpush1.msra.mxu0 0.0
  %154 = vmatprep.subr.mxu0 0.0
  %155 = vmatpush1.msra.mxu0 0.0
  %156 = vmatprep.subr.mxu0 0.0
  %157 = vmatpush1.msra.mxu0 0.0
  %158 = vmatprep.subr.mxu0 0.0
  %159 = vmatpush1.msra.mxu0 0.0
  %160 = vmatprep.subr.mxu0 0.0
  %161 = vmatpush1.msra.mxu0 0.0
  %162 = vmatprep.subr.mxu0 0.0
  %163 = vmatpush1.msra.mxu0 0.0
  %164 = vmatprep.subr.mxu0 0.0
  %165 = vmatpush1.msra.mxu0 0.0
  %166 = vmatprep.subr.mxu0 0.0
  %167 = vmatpush1.msra.mxu0 0.0
  %168 = vmatprep.subr.mxu0 0.0
  %169 = vmatpush1.msra.mxu0 0.0
  %170 = vmatprep.subr.mxu0 0.0
  %171 = vmatpush1.msra.mxu0 0.0
  %172 = vmatprep.subr.mxu0 0.0
  %173 = vmatpush1.msra.mxu0 0.0
  %174 = vmatprep.subr.mxu0 0.0
  %175 = vmatpush1.msra.mxu0 0.0
  %176 = vmatprep.subr.mxu0 0.0
  %177 = vmatpush1.msra.mxu0 0.0
  %178 = vmatprep.subr.mxu0 0.0
  %179 = vmatpush1.msra.mxu0 0.0
  %180 = vmatprep.subr.mxu0 0.0
  %181 = vmatpush1.msra.mxu0 0.0
  %182 = vmatprep.subr.mxu0 0.0
  %183 = vmatpush1.msra.mxu0 0.0
  %184 = vmatprep.subr.mxu0 0.0
  %185 = vmatpush1.msra.mxu0 0.0
  %186 = vmatprep.subr.mxu0 0.0
  %187 = vmatpush1.msra.mxu0 0.0
  %188 = vmatprep.subr.mxu0 0.0
  %189 = vmatpush1.msra.mxu0 0.0
  %190 = vmatprep.subr.mxu0 0.0
  %191 = vmatpush1.msra.mxu0 0.0
  %192 = vmatprep.subr.mxu0 0.0
  %193 = vmatpush1.msra.mxu0 0.0
  %194 = vmatprep.subr.mxu0 0.0
  %195 = vmatpush1.msra.mxu0 0.0
  %196 = vmatprep.subr.mxu0 0.0
  %197 = vmatpush1.msra.mxu0 0.0
  %198 = vmatprep.mubr.f32.mxu0 0.0
  %199 = vmatmul.mubr.f32.gmra.mrb[0].mxu0 %v129
  %v200 = vpop.f32.mrb[0].mxu0
  %v201 = vadd.f32 %v125, %v200
  %v202 = vpop.f32.mrb[0].mxu0
  %203 = vmatprep.mubr.f32.mxu0 0.0
  %204 = vmatmul.mubr.f32.gmra.mrb[0].mxu0 %v132
  %v205 = vpop.f32.mrb[0].mxu0
  %v206 = vadd.f32 %v125, %v205
  %v207 = vpop.f32.mrb[0].mxu0
  %208 = vdwg.mxu0
  %v209 = vmax.f32 %v201, 0.0
  %v210 = vmax.f32 %v206, 0.0
  %v211 = vand.u32 2147483647, %v201
  %v212 = vand.u32 2147483647, %v206
  %v213 = vsub.f32 0.0, %v211
  %v214 = vsub.f32 0.0, %v212
  %v215 = vmul.f32 %v213, 1.442695
  %v216 = vpow.pop %v215
  %v217 = vmul.f32 %v214, 1.442695
  %v218 = vpow.pop %v217
  %v219 = vadd.f32 %v216, 1.0
  %v220 = vlog2.pop %v219
  %v221 = vmul.f32 %v220, 0.6931472
  %v222 = vmul.f32 -0.5, %v216
  %v223 = vadd.f32 %v222, 1.0
  %v224 = vmul.f32 %v223, %v216
  %v225 = vand.u32 2147483647, %v216
  %vm226 = vcmp.lt.f32.partialorder %v225, 0.0004427343
  %v227 = vsel %vm226, %v224, %v221
  %v228 = vadd.f32 %v218, 1.0
  %v229 = vlog2.pop %v228
  %v230 = vmul.f32 %v229, 0.6931472
  %v231 = vmul.f32 -0.5, %v218
  %v232 = vadd.f32 %v231, 1.0
  %v233 = vmul.f32 %v232, %v218
  %v234 = vand.u32 2147483647, %v218
  %vm235 = vcmp.lt.f32.partialorder %v234, 0.0004427343
  %v236 = vsel %vm235, %v233, %v230
  %v237 = vadd.f32 %v209, %v227
  %v238 = vadd.f32 %v210, %v236
  %v239 = vadd.f32 %v237, 1.0
  %v240 = vadd.f32 %v238, 1.0
  %vm241 = vcmask 15360
  %242 = vst.msk [vmem:[%s5] sm:$0xff] %vm241, %v239
  %243 = vst.msk [vmem:[%s5 + $0x8] sm:$0xff] %vm241, %v240
  %246 = vrot.lane.b32.xlu0 %v239, 126
  %v247 = vpop.permute.xlu0 %246
  %248 = vrot.lane.b32.xlu0 %v240, 126
  %v249 = vpop.permute.xlu0 %248
  %252 = vst.msk [vmem:[%s6] sm:$0xff] %vm241, %v247
  %253 = vst.msk [vmem:[%s6 + $0x8] sm:$0xff] %vm241, %v249
  // Predicated region
  $region22: #{actor_forward.1} parent=0 // pred_check
    _
  $region23: #{actor_forward.1} parent=0 // pred_check_branch
    %255 = sbr.rel (0) target = $region25
  $region24: #{actor_forward.1} parent=0 // pred_region
    _
  $region25: #{actor_forward.1} parent=0 // pred_fallthru
    _
  // Predicated region
  $region26: #{actor_forward.1} parent=0 // pred_check
    _
  $region27: #{actor_forward.1} parent=0 // pred_check_branch
    %257 = sbr.rel (0) target = $region29
  $region28: #{actor_forward.1} parent=0 // pred_region
    _
  $region29: #{actor_forward.1} parent=0 // pred_fallthru
    _
  // Predicated region
  $region30: #{actor_forward.1} parent=0 // pred_check
    _
  $region31: #{actor_forward.1} parent=0 // pred_check_branch
    %259 = sbr.rel (0) target = $region33
  $region32: #{actor_forward.1} parent=0 // pred_region
    _
  $region33: #{actor_forward.1} parent=0 // pred_fallthru
    _
  // Predicated region
  $region34: #{actor_forward.1} parent=0 // pred_check
    _
  $region35: #{actor_forward.1} parent=0 // pred_check_branch
    %261 = sbr.rel (0) target = $region37
  $region36: #{actor_forward.1} parent=0 // pred_region
    _
  $region37: #{actor_forward.1} parent=0 // pred_fallthru
    _

</llo_original>
